<compile_context>
chip_gen: v6e
topology: v6e:2x2x1
jax: 0.10.0
libtpu: 0.0.40
codegen_flags: <defaults>
</compile_context>

<pallas_src>
import functools

import jax
import jax.numpy as jnp
from jax.experimental import pallas as pl
from jax.experimental.pallas import tpu as pltpu

_VMEM_LIMIT = 32 * 1024 * 1024  # explicit & safe on v5e/v6e (128 MiB) and v7x (64 MiB)


def _conv_tile(slab, w_ref, *, K, stride, dilation, tl):
    """K shifted MXU accumulations over a halo'd (Cin, tile*stride + halo) slab."""
    cout = w_ref.shape[1]
    acc = jnp.zeros((cout, tl), jnp.float32)
    for k in range(K):                                  # static unroll
        start = k * dilation
        if stride == 1:
            xs = slab[:, start:start + tl]
        else:
            xs = slab[:, start:start + (tl - 1) * stride + 1:stride]
        acc = acc + jnp.dot(w_ref[k], xs, preferred_element_type=jnp.float32)
    return acc


def _conv_stats_kernel(x_cur_ref, x_halo_ref, w_ref, sum_ref, m2_ref,
                       *, K, stride, dilation, tl, l_out):
    """Pass 1: conv tile -> per-(sample, tile) masked sum and centered M2 (f32)."""
    t = pl.program_id(1)
    slab = jnp.concatenate([x_cur_ref[0], x_halo_ref[0]], axis=-1)  # (Cin, TLS+HALO)
    acc = _conv_tile(slab, w_ref, K=K, stride=stride, dilation=dilation, tl=tl)

    # Mask output positions >= L_out (ragged last tile / zero-padded region).
    lane = jax.lax.broadcasted_iota(jnp.int32, (1, tl), 1) + t * tl
    mask = lane < l_out
    cnt_t = jnp.minimum(tl, l_out - t * tl).astype(jnp.float32)
    tile_sum = jnp.sum(jnp.where(mask, acc, 0.0), axis=1, keepdims=True)   # (Cout, 1)
    tile_mean = tile_sum / cnt_t
    centered = jnp.where(mask, acc - tile_mean, 0.0)
    tile_m2 = jnp.sum(centered * centered, axis=1, keepdims=True)          # (Cout, 1)

    sum_ref[...] = tile_sum[None, None]                 # (1, 1, Cout, 1)
    m2_ref[...] = tile_m2[None, None]


def _conv_bn_kernel(x_cur_ref, x_halo_ref, w_ref, shift_ref, o_ref,
                    *, K, stride, dilation, tl):
    """Pass 2: recompute the conv with BN folded into the weights, add shift, store."""
    slab = jnp.concatenate([x_cur_ref[0], x_halo_ref[0]], axis=-1)
    acc = _conv_tile(slab, w_ref, K=K, stride=stride, dilation=dilation, tl=tl)
    o_ref[...] = (acc + shift_ref[...])[None].astype(o_ref.dtype)   # lane-dense store


def conv_block_forward(x, w, *, stride=1, padding=1, dilation=1, eps=1e-5, tile=None):
    """ConvBlock forward: Conv1d (no bias) + training-mode BatchNorm1d.

    x: (N, C_in, L)   w: (C_out, C_in, K)   returns (N, C_out, L_out)
    """
    N, Cin, L = x.shape
    Cout, _, K = w.shape
    L_out = (L + 2 * padding - dilation * (K - 1) - 1) // stride + 1
    assert L_out > 0

    # Lane tile over output positions: multiple of 128, big enough to amortize the
    # per-grid-step overhead, tiny vs. VMEM even double-buffered.
    if tile is None:
        tile = max(128, min(1024, pl.cdiv(L_out, 128) * 128))
    assert tile % 128 == 0

    T = pl.cdiv(L_out, tile)              # position tiles per sample
    TLS = tile * stride                   # main input block width (lanes)
    HALO = 128 * max(1, pl.cdiv((K - 1) * dilation, 128))   # small halo block
    assert TLS % HALO == 0, "enlarge tile so the halo block divides the main block"
    assert (tile - 1) * stride + (K - 1) * dilation + 1 <= TLS + HALO
    ratio = TLS // HALO
    LP = T * TLS + HALO                   # padded input length (all blocks in-bounds)

    # Layout plumbing only: zero-pad the position axis, weights -> (K, Cout, Cin).
    x_pad = jnp.pad(x, ((0, 0), (0, 0), (padding, LP - L - padding)))
    w_t = jnp.transpose(w, (2, 0, 1)).astype(x.dtype)               # (K, Cout, Cin)

    x_cur_spec = pl.BlockSpec((1, Cin, TLS), lambda n, t: (n, 0, t))
    x_halo_spec = pl.BlockSpec((1, Cin, HALO), lambda n, t: (n, 0, (t + 1) * ratio))
    w_spec = pl.BlockSpec((K, Cout, Cin), lambda n, t: (0, 0, 0))   # VMEM-resident

    # --- pass 1: tiled conv -> per-(sample, tile) BN statistics only -------------
    kern1 = functools.partial(_conv_stats_kernel, K=K, stride=stride,
                              dilation=dilation, tl=tile, l_out=L_out)
    sum_nt, m2_nt = pl.pallas_call(
        kern1,
        out_shape=(
            jax.ShapeDtypeStruct((N, T, Cout, 1), jnp.float32),
            jax.ShapeDtypeStruct((N, T, Cout, 1), jnp.float32),
        ),
        grid=(N, T),
        in_specs=[x_cur_spec, x_halo_spec, w_spec],
        out_specs=[
            pl.BlockSpec((1, 1, Cout, 1), lambda n, t: (n, t, 0, 0)),
            pl.BlockSpec((1, 1, Cout, 1), lambda n, t: (n, t, 0, 0)),
        ],
        compiler_params=pltpu.CompilerParams(
            dimension_semantics=("parallel", "parallel"),   # both axes megacore-able
            vmem_limit_bytes=_VMEM_LIMIT),
    )(x_pad, x_pad, w_t)

    # --- combine per-tile stats in the wrapper (exact pooled variance, all f32) --
    sum_nt = sum_nt[..., 0]                                  # (N, T, Cout)
    m2_nt = m2_nt[..., 0]
    cnt = jnp.full((T,), float(tile), jnp.float32)
    cnt = cnt.at[T - 1].set(float(L_out - (T - 1) * tile))   # ragged last tile
    total = float(N * L_out)
    mean_g = jnp.sum(sum_nt, axis=(0, 1)) / total            # (Cout,)
    mean_nt = sum_nt / cnt[None, :, None]
    m2 = (jnp.sum(m2_nt, axis=(0, 1))
          + jnp.sum(cnt[None, :, None] * (mean_nt - mean_g) ** 2, axis=(0, 1)))
    invstd = jax.lax.rsqrt(m2 / total + eps)                 # (Cout,)

    # Fold BN into the conv: y = conv(x; w*invstd) - mean*invstd.
    w_bn = (w_t * invstd[None, :, None]).astype(jnp.float32)
    shift = (-mean_g * invstd).reshape(Cout, 1).astype(jnp.float32)

    # --- pass 2: recompute conv with folded weights, write (N, Cout, L_out) ------
    kern2 = functools.partial(_conv_bn_kernel, K=K, stride=stride,
                              dilation=dilation, tl=tile)
    out = pl.pallas_call(
        kern2,
        out_shape=jax.ShapeDtypeStruct((N, Cout, L_out), x.dtype),  # direct, no slice
        grid=(N, T),
        in_specs=[
            x_cur_spec, x_halo_spec,
            pl.BlockSpec((K, Cout, Cin), lambda n, t: (0, 0, 0)),   # resident
            pl.BlockSpec((Cout, 1), lambda n, t: (0, 0)),           # resident shift
        ],
        out_specs=pl.BlockSpec((1, Cout, tile), lambda n, t: (n, 0, t)),
        compiler_params=pltpu.CompilerParams(
            dimension_semantics=("parallel", "parallel"),
            vmem_limit_bytes=_VMEM_LIMIT),
    )(x_pad, x_pad, w_bn, shift)

    return out  # already PyTorch NCL layout, already L_out wide


def _reference(x, w, *, stride=1, padding=1, dilation=1, eps=1e-5):
    """Pure-JAX reference of Conv1d (no bias) + training-mode BatchNorm1d."""
    conv = jax.lax.conv_general_dilated(
        x, w,
        window_strides=(stride,),
        padding=[(padding, padding)],
        rhs_dilation=(dilation,),
        dimension_numbers=("NCH", "OIH", "NCH"),
    )
    mean = conv.mean(axis=(0, 2), keepdims=True)
    var = ((conv - mean) ** 2).mean(axis=(0, 2), keepdims=True)
    return (conv - mean) / jnp.sqrt(var + eps)


if __name__ == "__main__":
    # ConvBlock(ni=4, no=8, ker=3, std=1, pad=1, bias=False, bn=True, act=None, dpc=None)
    N, Cin, L = 2, 4, 16
    Cout, K = 8, 3
    stride, pad, dil = 1, 1, 1

    key = jax.random.PRNGKey(0)
    kx, kw = jax.random.split(key)
    x = jax.random.normal(kx, (N, Cin, L), dtype=jnp.float32)
    # deterministic synthetic Conv1d weight (shape matches nn.Conv1d(ni, no, ker))
    w = jax.random.normal(kw, (Cout, Cin, K), dtype=jnp.float32) * 0.1

    z = conv_block_forward(x, w, stride=stride, padding=pad, dilation=dil)
    z = jax.block_until_ready(z)

    z_ref = _reference(x, w, stride=stride, padding=pad, dilation=dil)
    assert z.shape == (N, Cout, L), z.shape
    assert jnp.allclose(z, z_ref, atol=1e-4, rtol=1e-4), float(
        jnp.max(jnp.abs(z - z_ref)))

    print("KERNEL_OK")
</pallas_src>

<mosaic_0001>
module attributes {stable_mosaic.version = 11 : i64} {
  func.func @_conv_stats_kernel(%arg0: i32, %arg1: i32, %arg2: memref<1x4x128xf32, #tpu.memory_space<vmem>>, %arg3: memref<1x4x128xf32, #tpu.memory_space<vmem>>, %arg4: memref<3x8x4xf32, #tpu.memory_space<vmem>>, %arg5: memref<1x1x8x1xf32, #tpu.memory_space<vmem>>, %arg6: memref<1x1x8x1xf32, #tpu.memory_space<vmem>>) attributes {dimension_semantics = [#tpu.dimension_semantics<parallel>, #tpu.dimension_semantics<parallel>], iteration_bounds = array<i64: 2, 1>, scalar_prefetch = 0 : i64, scratch_operands = 0 : i64, tpu.core_type = #tpu.core_type<tc>, window_params = [{transform_indices = @transform_0, window_bounds = array<i64: 1, 4, 128>}, {transform_indices = @transform_1, window_bounds = array<i64: 1, 4, 128>}, {pipeline_mode = #tpu.pipeline_mode<synchronous>, transform_indices = @transform_2, window_bounds = array<i64: 3, 8, 4>}, {transform_indices = @transform_3, window_bounds = array<i64: 1, 1, 8, 1>}, {transform_indices = @transform_4, window_bounds = array<i64: 1, 1, 8, 1>}]} {
    %c0 = arith.constant 0 : index
    %c0_0 = arith.constant 0 : index
    %c0_1 = arith.constant 0 : index
    %0 = vector.load %arg2[%c0, %c0_0, %c0_1] : memref<1x4x128xf32, #tpu.memory_space<vmem>>, vector<1x4x128xf32>
    %1 = vector.shape_cast %0 : vector<1x4x128xf32> to vector<4x128xf32>
    %c0_2 = arith.constant 0 : index
    %c0_3 = arith.constant 0 : index
    %c0_4 = arith.constant 0 : index
    %2 = vector.load %arg3[%c0_2, %c0_3, %c0_4] : memref<1x4x128xf32, #tpu.memory_space<vmem>>, vector<1x4x128xf32>
    %3 = vector.shape_cast %2 : vector<1x4x128xf32> to vector<4x128xf32>
    %4 = tpu.concatenate %1, %3 in 1 : vector<4x128xf32>, vector<4x128xf32> -> vector<4x256xf32>
    %cst = arith.constant 0.000000e+00 : f32
    %5 = vector.broadcast %cst : f32 to vector<8x128xf32>
    %6 = vector.extract_strided_slice %4 {offsets = [0, 0], sizes = [4, 128], strides = [1, 1]} : vector<4x256xf32> to vector<4x128xf32>
    %c0_5 = arith.constant 0 : index
    %c0_6 = arith.constant 0 : index
    %c0_7 = arith.constant 0 : index
    %7 = vector.load %arg4[%c0_5, %c0_6, %c0_7] : memref<3x8x4xf32, #tpu.memory_space<vmem>>, vector<1x8x4xf32>
    %8 = vector.shape_cast %7 : vector<1x8x4xf32> to vector<8x4xf32>
    %cst_8 = arith.constant dense<0.000000e+00> : vector<8x128xf32>
    %9 = tpu.matmul %8, %6, %cst_8 {dimension_numbers = #tpu.dot_dimension_numbers<[1], [0], [0], [1], [0, 0, 1, 1], [], []>} : vector<8x4xf32>, vector<4x128xf32>, vector<8x128xf32> -> vector<8x128xf32>
    %10 = arith.addf %5, %9 : vector<8x128xf32>
    %11 = vector.extract_strided_slice %4 {offsets = [0, 1], sizes = [4, 128], strides = [1, 1]} : vector<4x256xf32> to vector<4x128xf32>
    %c1 = arith.constant 1 : index
    %c0_9 = arith.constant 0 : index
    %c0_10 = arith.constant 0 : index
    %12 = vector.load %arg4[%c1, %c0_9, %c0_10] : memref<3x8x4xf32, #tpu.memory_space<vmem>>, vector<1x8x4xf32>
    %13 = vector.shape_cast %12 : vector<1x8x4xf32> to vector<8x4xf32>
    %cst_11 = arith.constant dense<0.000000e+00> : vector<8x128xf32>
    %14 = tpu.matmul %13, %11, %cst_11 {dimension_numbers = #tpu.dot_dimension_numbers<[1], [0], [0], [1], [0, 0, 1, 1], [], []>} : vector<8x4xf32>, vector<4x128xf32>, vector<8x128xf32> -> vector<8x128xf32>
    %15 = arith.addf %10, %14 : vector<8x128xf32>
    %16 = vector.extract_strided_slice %4 {offsets = [0, 2], sizes = [4, 128], strides = [1, 1]} : vector<4x256xf32> to vector<4x128xf32>
    %c2 = arith.constant 2 : index
    %c0_12 = arith.constant 0 : index
    %c0_13 = arith.constant 0 : index
    %17 = vector.load %arg4[%c2, %c0_12, %c0_13] : memref<3x8x4xf32, #tpu.memory_space<vmem>>, vector<1x8x4xf32>
    %18 = vector.shape_cast %17 : vector<1x8x4xf32> to vector<8x4xf32>
    %cst_14 = arith.constant dense<0.000000e+00> : vector<8x128xf32>
    %19 = tpu.matmul %18, %16, %cst_14 {dimension_numbers = #tpu.dot_dimension_numbers<[1], [0], [0], [1], [0, 0, 1, 1], [], []>} : vector<8x4xf32>, vector<4x128xf32>, vector<8x128xf32> -> vector<8x128xf32>
    %20 = arith.addf %15, %19 : vector<8x128xf32>
    %21 = tpu.iota {dimensions = array<i32: 1>} : vector<1x128xi32>
    %c128_i32 = arith.constant 128 : i32
    %22 = arith.muli %arg1, %c128_i32 : i32
    %23 = vector.broadcast %22 : i32 to vector<1x128xi32>
    %24 = arith.addi %21, %23 : vector<1x128xi32>
    %c16_i32 = arith.constant 16 : i32
    %25 = vector.broadcast %c16_i32 : i32 to vector<1x128xi32>
    %26 = arith.cmpi slt, %24, %25 : vector<1x128xi32>
    %c128_i32_15 = arith.constant 128 : i32
    %27 = arith.muli %arg1, %c128_i32_15 : i32
    %c16_i32_16 = arith.constant 16 : i32
    %28 = arith.subi %c16_i32_16, %27 : i32
    %c128_i32_17 = arith.constant 128 : i32
    %29 = arith.minsi %c128_i32_17, %28 : i32
    %30 = arith.sitofp %29 : i32 to f32
    %cst_18 = arith.constant 0.000000e+00 : f32
    %31 = vector.shape_cast %26 : vector<1x128xi1> to vector<1x128xi1>
    %32 = vector.broadcast %31 : vector<1x128xi1> to vector<8x128xi1>
    %33 = vector.broadcast %cst_18 : f32 to vector<8x128xf32>
    %34 = arith.select %32, %20, %33 : vector<8x128xi1>, vector<8x128xf32>
    %cst_19 = arith.constant dense<0.000000e+00> : vector<8xf32>
    %35 = vector.multi_reduction <add>, %34, %cst_19 [1] : vector<8x128xf32> to vector<8xf32>
    %36 = vector.shape_cast %35 : vector<8xf32> to vector<8x1xf32>
    %37 = vector.broadcast %30 : f32 to vector<8x1xf32>
    %38 = arith.divf %36, %37 : vector<8x1xf32>
    %39 = vector.broadcast %38 : vector<8x1xf32> to vector<8x128xf32>
    %40 = arith.subf %20, %39 : vector<8x128xf32>
    %cst_20 = arith.constant 0.000000e+00 : f32
    %41 = vector.shape_cast %26 : vector<1x128xi1> to vector<1x128xi1>
    %42 = vector.broadcast %41 : vector<1x128xi1> to vector<8x128xi1>
    %43 = vector.broadcast %cst_20 : f32 to vector<8x128xf32>
    %44 = arith.select %42, %40, %43 : vector<8x128xi1>, vector<8x128xf32>
    %45 = arith.mulf %44, %44 : vector<8x128xf32>
    %cst_21 = arith.constant dense<0.000000e+00> : vector<8xf32>
    %46 = vector.multi_reduction <add>, %45, %cst_21 [1] : vector<8x128xf32> to vector<8xf32>
    %47 = vector.shape_cast %46 : vector<8xf32> to vector<8x1xf32>
    %48 = vector.shape_cast %36 : vector<8x1xf32> to vector<1x1x8x1xf32>
    %c0_22 = arith.constant 0 : index
    %c0_23 = arith.constant 0 : index
    %c0_24 = arith.constant 0 : index
    %c0_25 = arith.constant 0 : index
    %49 = vector.load %arg5[%c0_22, %c0_23, %c0_24, %c0_25] : memref<1x1x8x1xf32, #tpu.memory_space<vmem>>, vector<1x1x8x1xf32>
    tpu.vector_store %arg5[%c0_22, %c0_23, %c0_24, %c0_25], %48 {strides = array<i32>} : memref<1x1x8x1xf32, #tpu.memory_space<vmem>>, vector<1x1x8x1xf32>,
    %50 = vector.shape_cast %47 : vector<8x1xf32> to vector<1x1x8x1xf32>
    %c0_26 = arith.constant 0 : index
    %c0_27 = arith.constant 0 : index
    %c0_28 = arith.constant 0 : index
    %c0_29 = arith.constant 0 : index
    %51 = vector.load %arg6[%c0_26, %c0_27, %c0_28, %c0_29] : memref<1x1x8x1xf32, #tpu.memory_space<vmem>>, vector<1x1x8x1xf32>
    tpu.vector_store %arg6[%c0_26, %c0_27, %c0_28, %c0_29], %50 {strides = array<i32>} : memref<1x1x8x1xf32, #tpu.memory_space<vmem>>, vector<1x1x8x1xf32>,
    return
  }
  func.func @transform_0(%arg0: i32, %arg1: i32) -> (i32, i32, i32) {
    %c0_i32 = arith.constant 0 : i32
    %c0_i32_0 = arith.constant 0 : i32
    return %arg0, %c0_i32, %arg1 : i32, i32, i32
  }
  func.func @transform_1(%arg0: i32, %arg1: i32) -> (i32, i32, i32) {
    %c1_i32 = arith.constant 1 : i32
    %0 = arith.addi %arg1, %c1_i32 : i32
    %c1_i32_0 = arith.constant 1 : i32
    %1 = arith.muli %0, %c1_i32_0 : i32
    %c0_i32 = arith.constant 0 : i32
    %c0_i32_1 = arith.constant 0 : i32
    return %arg0, %c0_i32, %1 : i32, i32, i32
  }
  func.func @transform_2(%arg0: i32, %arg1: i32) -> (i32, i32, i32) {
    %c0_i32 = arith.constant 0 : i32
    %c0_i32_0 = arith.constant 0 : i32
    %c0_i32_1 = arith.constant 0 : i32
    %c0_i32_2 = arith.constant 0 : i32
    return %c0_i32, %c0_i32_0, %c0_i32_1 : i32, i32, i32
  }
  func.func @transform_3(%arg0: i32, %arg1: i32) -> (i32, i32, i32, i32) {
    %c0_i32 = arith.constant 0 : i32
    %c0_i32_0 = arith.constant 0 : i32
    %c0_i32_1 = arith.constant 0 : i32
    return %arg0, %arg1, %c0_i32, %c0_i32_0 : i32, i32, i32, i32
  }
  func.func @transform_4(%arg0: i32, %arg1: i32) -> (i32, i32, i32, i32) {
    %c0_i32 = arith.constant 0 : i32
    %c0_i32_0 = arith.constant 0 : i32
    %c0_i32_1 = arith.constant 0 : i32
    return %arg0, %arg1, %c0_i32, %c0_i32_0 : i32, i32, i32, i32
  }
}

</mosaic_0001>

<llo_original>
// kernel: tpu_custom_call.1
$region0: #{tpu_custom_call.1}
  #allocation0 [shape = 'u32[]', space=smem, size = 0x4, offset = 0x4, fixed_abs, tag = 'smem constant byte address 0x4 - core index']
  #allocation1 [shape = 'u32[144,128]{1,0:T(1,128)}', space=vmem, size = 0x12000, scoped, tag = 'internal scratch']
  %s0 = inlined_call_operand.vmem [shape: f32[2,4,256], index: 0, kind: input, shape index: {}]
  %s1 = inlined_call_operand.vmem [shape: f32[2,4,256], index: 1, kind: input, shape index: {}]
  %s2 = inlined_call_operand.vmem [shape: f32[3,8,4], index: 2, kind: input, shape index: {}]
  %s3 = inlined_call_operand.vmem [shape: f32[2,1,8,1], index: 3, kind: output, shape index: {0}]
  %s4 = inlined_call_operand.vmem [shape: f32[2,1,8,1], index: 4, kind: output, shape index: {1}]
  %5 = xla_tuple %s3, %s4
  %s6 = sld [smem:[#allocation0]]
  $region53: #{tpu_custom_call.1} parent=0
    _
  %s8 = ssub.s32 1, %s6
  %s9 = scalar_select 0, %s8, %s6
  loop: start=0, step=1, limit=4
  $region2: #{tpu_custom_call.1} parent=0 // loop_pre_header
    _
  $region3: #{tpu_custom_call.1} parent=0 // loop_header
    %s11 = sphi 0, %s15
    %p12 = scmp.ge.s32.totalorder %s11, 4
    %s18 = sphi 0, %s30
    %s19 = sphi 0, %s26
    %s20 = sphi 0, %s18
    %s21 = sphi 0, %s19
    %s22 = sphi 0, %s20
    %s23 = sphi 0, %s21
    %s35 = sphi 0, %s37
    %s38 = sphi 0, %s35
    %s39 = sphi 0, %s38
    %s55 = sphi 0, %s39
    %s65 = sphi 0, %s67
    %s68 = sphi 0, %s65
    %s69 = sphi 0, %s68
    %s85 = sphi 0, %s69
    %s89 = sphi 0, %s89
    %s91 = sphi 0, %s89
    %s92 = sphi 0, %s91
    %s106 = sphi 0, %s92
    %s114 = sphi 0, %s116
    %s117 = sphi 0, %s114
    %s118 = sphi 0, %s117
    %s134 = sphi 0, %s118
    %s142 = sphi 0, %s144
    %s145 = sphi 0, %s142
    %s146 = sphi 0, %s145
    %s162 = sphi 0, %s146
  $region4: #{tpu_custom_call.1} parent=0 // loop_header_branch
    %14 = sbr.rel (%p12) target = $region8
  $region5: #{tpu_custom_call.1} parent=0 // loop_body
    %s16 = ssub.s32 %s11, 1
    %s17 = ssub.s32 %s11, 2
    %s24 = sadd.s32 1, %s19
    %p25 = scmp.ge.s32.totalorder %s24, 1
    %s26 = scalar_select %p25, 0, %s24
    %s27 = sadd.s32 1, %s18
    %s28 = scalar_select %p25, %s27, %s18
    %p29 = scmp.ge.s32.totalorder %s28, 2
    %s30 = scalar_select %p29, 0, %s28
    %s31 = ssub.s32 %s18, %s30
    %s32 = ssub.s32 %s19, %s26
    %s33 = sor.u32 %s31, %s32
    %p34 = scmp.eq.s32.totalorder %s33, 0
    %s36 = sadd.s32 %s35, 1
    %s37 = scalar_select %p34, %s35, %s36
    %p40 = pneg %p34
    %p41 = scmp.eq.s32.totalorder %s11, 1
    %p42 = por %p40, %p41
    %p43 = scmp.ne.s32.totalorder %s35, %s38
    %p44 = scmp.eq.s32.totalorder %s11, 0
    %p45 = por %p43, %p44
    %p46 = scmp.ne.s32.totalorder %s35, %s38
    %p47 = scmp.eq.s32.totalorder %s16, 1
    %p48 = por %p46, %p47
    %p49 = scmp.ne.s32.totalorder %s38, %s39
    %p50 = scmp.eq.s32.totalorder %s16, 0
    %p51 = por %p49, %p50
    %p52 = scmp.ne.s32.totalorder %s38, %s39
    %p53 = scmp.eq.s32.totalorder %s17, 1
    %p54 = por %p52, %p53
    %p56 = scmp.ne.s32.totalorder %s39, %s55
    %p57 = scmp.eq.s32.totalorder %s17, 0
    %p58 = por %p56, %p57
    %s59 = sadd.s32 %s19, 1
    %s60 = sadd.s32 %s26, 1
    %s61 = ssub.s32 %s18, %s30
    %s62 = ssub.s32 %s59, %s60
    %s63 = sor.u32 %s61, %s62
    %p64 = scmp.eq.s32.totalorder %s63, 0
    %s66 = sadd.s32 %s65, 1
    %s67 = scalar_select %p64, %s65, %s66
    %p70 = pneg %p64
    %p71 = scmp.eq.s32.totalorder %s11, 1
    %p72 = por %p70, %p71
    %p73 = scmp.ne.s32.totalorder %s65, %s68
    %p74 = scmp.eq.s32.totalorder %s11, 0
    %p75 = por %p73, %p74
    %p76 = scmp.ne.s32.totalorder %s65, %s68
    %p77 = scmp.eq.s32.totalorder %s16, 1
    %p78 = por %p76, %p77
    %p79 = scmp.ne.s32.totalorder %s68, %s69
    %p80 = scmp.eq.s32.totalorder %s16, 0
    %p81 = por %p79, %p80
    %p82 = scmp.ne.s32.totalorder %s68, %s69
    %p83 = scmp.eq.s32.totalorder %s17, 1
    %p84 = por %p82, %p83
    %p86 = scmp.ne.s32.totalorder %s69, %s85
    %p87 = scmp.eq.s32.totalorder %s17, 0
    %p88 = por %p86, %p87
    %s90 = sadd.s32 %s89, 1
    %p93 = scmp.eq.s32.totalorder %s11, 1
    %p94 = scmp.ne.s32.totalorder %s89, %s91
    %p95 = scmp.eq.s32.totalorder %s11, 0
    %p96 = por %p94, %p95
    %p97 = scmp.ne.s32.totalorder %s89, %s91
    %p98 = scmp.eq.s32.totalorder %s16, 1
    %p99 = por %p97, %p98
    %p100 = scmp.ne.s32.totalorder %s91, %s92
    %p101 = scmp.eq.s32.totalorder %s16, 0
    %p102 = por %p100, %p101
    %p103 = scmp.ne.s32.totalorder %s91, %s92
    %p104 = scmp.eq.s32.totalorder %s17, 1
    %p105 = por %p103, %p104
    %p107 = scmp.ne.s32.totalorder %s92, %s106
    %p108 = scmp.eq.s32.totalorder %s17, 0
    %p109 = por %p107, %p108
    %s110 = ssub.s32 %s18, %s30
    %s111 = ssub.s32 %s19, %s26
    %s112 = sor.u32 %s110, %s111
    %p113 = scmp.eq.s32.totalorder %s112, 0
    %s115 = sadd.s32 %s114, 1
    %s116 = scalar_select %p113, %s114, %s115
    %p119 = pneg %p113
    %p120 = scmp.eq.s32.totalorder %s11, 1
    %p121 = por %p119, %p120
    %p122 = scmp.ne.s32.totalorder %s114, %s117
    %p123 = scmp.eq.s32.totalorder %s11, 0
    %p124 = por %p122, %p123
    %p125 = scmp.ne.s32.totalorder %s114, %s117
    %p126 = scmp.eq.s32.totalorder %s16, 1
    %p127 = por %p125, %p126
    %p128 = scmp.ne.s32.totalorder %s117, %s118
    %p129 = scmp.eq.s32.totalorder %s16, 0
    %p130 = por %p128, %p129
    %p131 = scmp.ne.s32.totalorder %s117, %s118
    %p132 = scmp.eq.s32.totalorder %s17, 1
    %p133 = por %p131, %p132
    %p135 = scmp.ne.s32.totalorder %s118, %s134
    %p136 = scmp.eq.s32.totalorder %s17, 0
    %p137 = por %p135, %p136
    %s138 = ssub.s32 %s18, %s30
    %s139 = ssub.s32 %s19, %s26
    %s140 = sor.u32 %s138, %s139
    %p141 = scmp.eq.s32.totalorder %s140, 0
    %s143 = sadd.s32 %s142, 1
    %s144 = scalar_select %p141, %s142, %s143
    %p147 = pneg %p141
    %p148 = scmp.eq.s32.totalorder %s11, 1
    %p149 = por %p147, %p148
    %p150 = scmp.ne.s32.totalorder %s142, %s145
    %p151 = scmp.eq.s32.totalorder %s11, 0
    %p152 = por %p150, %p151
    %p153 = scmp.ne.s32.totalorder %s142, %s145
    %p154 = scmp.eq.s32.totalorder %s16, 1
    %p155 = por %p153, %p154
    %p156 = scmp.ne.s32.totalorder %s145, %s146
    %p157 = scmp.eq.s32.totalorder %s16, 0
    %p158 = por %p156, %p157
    %p159 = scmp.ne.s32.totalorder %s145, %s146
    %p160 = scmp.eq.s32.totalorder %s17, 1
    %p161 = por %p159, %p160
    %p163 = scmp.ne.s32.totalorder %s146, %s162
    %p164 = scmp.eq.s32.totalorder %s17, 0
    %p165 = por %p163, %p164
    %p166 = scmp.le.s32.totalorder 1, %s11
    %p167 = scmp.lt.s32.totalorder %s11, 3
    %p168 = pnand %p166, %p167
    %p169 = pneg %p168
    // Predicated region
    $region9: #{tpu_custom_call.1} parent=5 // pred_check
      _
    $region10: #{tpu_custom_call.1} parent=5 // pred_check_branch
      %171 = sbr.rel (%p168) target = $region12
    $region11: #{tpu_custom_call.1} parent=5 // pred_region
      %s172 = ssub.s32 %s11, 1
      // Predicated region
      $region13: #{tpu_custom_call.1} parent=11 // pred_check
        %p173 = pneg %p102
      $region14: #{tpu_custom_call.1} parent=11 // pred_check_branch
        %175 = sbr.rel (%p173) target = $region16
      $region15: #{tpu_custom_call.1} parent=11 // pred_region
        _
      $region16: #{tpu_custom_call.1} parent=11 // pred_fallthru
        _
    $region12: #{tpu_custom_call.1} parent=5 // pred_fallthru
      _
    %p176 = scmp.lt.s32.totalorder %s11, 2
    // Predicated region
    $region17: #{tpu_custom_call.1} parent=5 // pred_check
      %p177 = pneg %p176
    $region18: #{tpu_custom_call.1} parent=5 // pred_check_branch
      %179 = sbr.rel (%p177) target = $region20
    $region19: #{tpu_custom_call.1} parent=5 // pred_region
      // Predicated region
      $region21: #{tpu_custom_call.1} parent=19 // pred_check
        %p180 = pneg %p45
      $region22: #{tpu_custom_call.1} parent=19 // pred_check_branch
        %182 = sbr.rel (%p180) target = $region24
      $region23: #{tpu_custom_call.1} parent=19 // pred_region
        %p183 = scmp.lt.s32.totalorder %s18, 1
        %s184 = scalar_select %p183, %s18, 1
        %p185 = scmp.lt.s32.totalorder %s19, 1
        %s186 = scalar_select %p185, %s19, 1
        %s187 = smul.addr %s184, 2
        %s188 = sadd.s32 %s186, %s187
        %s189 = smul.addr %s188, 4
        %s190 = scalar_lea.vmem %s0, %s189
      $region24: #{tpu_custom_call.1} parent=19 // pred_fallthru
        _
      // Predicated region
      $region25: #{tpu_custom_call.1} parent=19 // pred_check
        %p191 = pneg %p75
      $region26: #{tpu_custom_call.1} parent=19 // pred_check_branch
        %193 = sbr.rel (%p191) target = $region28
      $region27: #{tpu_custom_call.1} parent=19 // pred_region
        %s194 = sadd.s32 %s19, 1
        %p195 = scmp.lt.s32.totalorder %s18, 1
        %s196 = scalar_select %p195, %s18, 1
        %p197 = scmp.lt.s32.totalorder %s194, 1
        %s198 = scalar_select %p197, %s194, 1
        %s199 = smul.addr %s196, 2
        %s200 = sadd.s32 %s198, %s199
        %s201 = smul.addr %s200, 4
        %s202 = scalar_lea.vmem %s1, %s201
        %s203 = sadd.s32 %s19, 1
      $region28: #{tpu_custom_call.1} parent=19 // pred_fallthru
        _
    $region20: #{tpu_custom_call.1} parent=5 // pred_fallthru
      _
    %p204 = scmp.le.s32.totalorder 1, %s11
    %p205 = scmp.lt.s32.totalorder %s11, 3
    %p206 = pnand %p204, %p205
    %p207 = pneg %p206
    // Predicated region
    $region29: #{tpu_custom_call.1} parent=5 // pred_check
      _
    $region30: #{tpu_custom_call.1} parent=5 // pred_check_branch
      %209 = sbr.rel (%p206) target = $region32
    $region31: #{tpu_custom_call.1} parent=5 // pred_region
      %s210 = ssub.s32 %s11, 1
      %p211 = scmp.lt.s32.totalorder %s20, 1
      %s212 = scalar_select %p211, %s20, 1
      %p213 = scmp.lt.s32.totalorder %s21, 1
      %s214 = scalar_select %p213, %s21, 1
      %s215 = smul.addr %s212, 2
      %s216 = sadd.s32 %s214, %s215
      %s217 = smul.addr %s216, 4
      %s218 = scalar_lea.vmem %s0, %s217
      %p219 = pneg %p51
      %p220 = pneg %p48
      %s221 = sadd.s32 %s21, 1
      %p222 = scmp.lt.s32.totalorder %s20, 1
      %s223 = scalar_select %p222, %s20, 1
      %p224 = scmp.lt.s32.totalorder %s221, 1
      %s225 = scalar_select %p224, %s221, 1
      %s226 = smul.addr %s223, 2
      %s227 = sadd.s32 %s225, %s226
      %s228 = smul.addr %s227, 4
      %s229 = scalar_lea.vmem %s1, %s228
      %p230 = pneg %p81
      %p231 = pneg %p78
      %p232 = pneg %p102
      %p233 = pneg %p99
      %p234 = pneg %p130
      %p235 = pneg %p127
      %p236 = scmp.lt.s32.totalorder %s20, 1
      %s237 = scalar_select %p236, %s20, 1
      %p238 = scmp.lt.s32.totalorder %s21, 0
      %s239 = scalar_select %p238, %s21, 0
      %s240 = sadd.s32 %s239, %s237
      %s241 = smul.addr %s240, 8
      %s242 = scalar_lea.vmem %s3, %s241
      %p243 = pneg %p158
      %p244 = pneg %p155
      %p245 = scmp.lt.s32.totalorder %s20, 1
      %s246 = scalar_select %p245, %s20, 1
      %p247 = scmp.lt.s32.totalorder %s21, 0
      %s248 = scalar_select %p247, %s21, 0
      %s249 = sadd.s32 %s248, %s246
      %s250 = smul.addr %s249, 8
      %s251 = scalar_lea.vmem %s4, %s250
      %p252 = scmp.lt.s32.totalorder %s20, 1
      %s253 = scalar_select %p252, %s20, 1
      %p254 = scmp.lt.s32.totalorder %s21, 1
      %s255 = scalar_select %p254, %s21, 1
      %s256 = smul.addr %s253, 2
      %s257 = sadd.s32 %s255, %s256
      %s258 = smul.addr %s257, 4
      %s259 = scalar_lea.vmem %s0, %s258
      %s260 = sadd.s32 %s21, 1
      %p261 = scmp.lt.s32.totalorder %s20, 1
      %s262 = scalar_select %p261, %s20, 1
      %p263 = scmp.lt.s32.totalorder %s260, 1
      %s264 = scalar_select %p263, %s260, 1
      %s265 = smul.addr %s262, 2
      %s266 = sadd.s32 %s264, %s265
      %s267 = smul.addr %s266, 4
      %s268 = scalar_lea.vmem %s1, %s267
      %s269 = sadd.s32 %s21, 1
      %p270 = scmp.lt.s32.totalorder %s20, 1
      %s271 = scalar_select %p270, %s20, 1
      %p272 = scmp.lt.s32.totalorder %s21, 0
      %s273 = scalar_select %p272, %s21, 0
      %s274 = sadd.s32 %s273, %s271
      %s275 = smul.addr %s274, 8
      %s276 = scalar_lea.vmem %s3, %s275
      %p277 = scmp.lt.s32.totalorder %s20, 1
      %s278 = scalar_select %p277, %s20, 1
      %p279 = scmp.lt.s32.totalorder %s21, 0
      %s280 = scalar_select %p279, %s21, 0
      %s281 = sadd.s32 %s280, %s278
      %s282 = smul.addr %s281, 8
      %s283 = scalar_lea.vmem %s4, %s282
      %v284 = vld [vmem:[%s259] sm:$0xf]
      %v285 = vld [vmem:[%s268] sm:$0xf]
      %v286 = vld [vmem:[%s2] sm:$0xff]
      %s287 = scalar_lea.vmem %s2, 8
      %v288 = vld [vmem:[%s287] sm:$0xff]
      %291 = vrot.lane.b32.xlu0 %v284, 127
      %v292 = vpop.permute.xlu0 %291
      %293 = vrot.lane.b32.xlu0 %v285, 127
      %v294 = vpop.permute.xlu0 %293
      %vm295 = vcmask 1039360
      %v296 = vsel %vm295, %v292, %v294
      %vm297 = vcmask 31744
      %v299 = vsel %vm297, %v288, 0
      %vm301 = vcmask 1043456
      %v302 = vsel %vm301, %v296, 0
      %304 = vmatprep.subr.mxu0 0.0
      %305 = vmatpush1.msra.mxu0 0.0
      %306 = vmatprep.subr.mxu0 0.0
      %307 = vmatpush1.msra.mxu0 0.0
      %308 = vmatprep.subr.mxu0 0.0
      %309 = vmatpush1.msra.mxu0 0.0
      %310 = vmatprep.subr.mxu0 0.0
      %311 = vmatpush1.msra.mxu0 0.0
      %312 = vmatprep.subr.mxu0 0.0
      %313 = vmatpush1.msra.mxu0 0.0
      %314 = vmatprep.subr.mxu0 0.0
      %315 = vmatpush1.msra.mxu0 0.0
      %316 = vmatprep.subr.mxu0 0.0
      %317 = vmatpush1.msra.mxu0 0.0
      %318 = vmatprep.subr.mxu0 0.0
      %319 = vmatpush1.msra.mxu0 0.0
      %320 = vmatprep.subr.mxu0 0.0
      %321 = vmatpush1.msra.mxu0 0.0
      %322 = vmatprep.subr.mxu0 0.0
      %323 = vmatpush1.msra.mxu0 0.0
      %324 = vmatprep.subr.mxu0 0.0
      %325 = vmatpush1.msra.mxu0 0.0
      %326 = vmatprep.subr.mxu0 0.0
      %327 = vmatpush1.msra.mxu0 0.0
      %328 = vmatprep.subr.mxu0 0.0
      %329 = vmatpush1.msra.mxu0 0.0
      %330 = vmatprep.subr.mxu0 0.0
      %331 = vmatpush1.msra.mxu0 0.0
      %332 = vmatprep.subr.mxu0 0.0
      %333 = vmatpush1.msra.mxu0 0.0
      %334 = vmatprep.subr.mxu0 0.0
      %335 = vmatpush1.msra.mxu0 %v302
      %336 = vmatprep.subr.mxu0 0.0
      %337 = vmatpush2.msra.mxu0 0.0
      %338 = vmatprep.subr.mxu0 0.0
      %339 = vmatpush2.msra.mxu0 0.0
      %340 = vmatprep.subr.mxu0 0.0
      %341 = vmatpush2.msra.mxu0 0.0
      %342 = vmatprep.subr.mxu0 0.0
      %343 = vmatpush2.msra.mxu0 0.0
      %344 = vmatprep.subr.mxu0 0.0
      %345 = vmatpush2.msra.mxu0 0.0
      %346 = vmatprep.subr.mxu0 0.0
      %347 = vmatpush2.msra.mxu0 0.0
      %348 = vmatprep.subr.mxu0 0.0
      %349 = vmatpush2.msra.mxu0 0.0
      %350 = vmatprep.subr.mxu0 0.0
      %351 = vmatpush2.msra.mxu0 0.0
      %352 = vmatprep.subr.mxu0 0.0
      %353 = vmatpush2.msra.mxu0 0.0
      %354 = vmatprep.subr.mxu0 0.0
      %355 = vmatpush2.msra.mxu0 0.0
      %356 = vmatprep.subr.mxu0 0.0
      %357 = vmatpush2.msra.mxu0 0.0
      %358 = vmatprep.subr.mxu0 0.0
      %359 = vmatpush2.msra.mxu0 0.0
      %360 = vmatprep.subr.mxu0 0.0
      %361 = vmatpush2.msra.mxu0 0.0
      %362 = vmatprep.subr.mxu0 0.0
      %363 = vmatpush2.msra.mxu0 0.0
      %364 = vmatprep.subr.mxu0 0.0
      %365 = vmatpush2.msra.mxu0 0.0
      %366 = vmatprep.subr.mxu0 0.0
      %367 = vmatpush2.msra.mxu0 0.0
      %368 = vmatprep.mubr.f32.mxu0 0.0
      %369 = vmatmul.mubr.f32.gmra.mxu0 %v299
      %v370 = vpop.f32.mrf.mxu0
      %v371 = vadd.f32 0.0, %v370
      %v372 = vpop.f32.mrf.mxu0
      %373 = vdwg.mxu0
      %v375 = vsel %vm297, %v286, 0
      %v377 = vsel %vm301, %v284, 0
      %379 = vmatprep.subr.mxu0 0.0
      %380 = vmatpush1.msra.mxu0 0.0
      %381 = vmatprep.subr.mxu0 0.0
      %382 = vmatpush1.msra.mxu0 0.0
      %383 = vmatprep.subr.mxu0 0.0
      %384 = vmatpush1.msra.mxu0 0.0
      %385 = vmatprep.subr.mxu0 0.0
      %386 = vmatpush1.msra.mxu0 0.0
      %387 = vmatprep.subr.mxu0 0.0
      %388 = vmatpush1.msra.mxu0 0.0
      %389 = vmatprep.subr.mxu0 0.0
      %390 = vmatpush1.msra.mxu0 0.0
      %391 = vmatprep.subr.mxu0 0.0
      %392 = vmatpush1.msra.mxu0 0.0
      %393 = vmatprep.subr.mxu0 0.0
      %394 = vmatpush1.msra.mxu0 0.0
      %395 = vmatprep.subr.mxu0 0.0
      %396 = vmatpush1.msra.mxu0 0.0
      %397 = vmatprep.subr.mxu0 0.0
      %398 = vmatpush1.msra.mxu0 0.0
      %399 = vmatprep.subr.mxu0 0.0
      %400 = vmatpush1.msra.mxu0 0.0
      %401 = vmatprep.subr.mxu0 0.0
      %402 = vmatpush1.msra.mxu0 0.0
      %403 = vmatprep.subr.mxu0 0.0
      %404 = vmatpush1.msra.mxu0 0.0
      %405 = vmatprep.subr.mxu0 0.0
      %406 = vmatpush1.msra.mxu0 0.0
      %407 = vmatprep.subr.mxu0 0.0
      %408 = vmatpush1.msra.mxu0 0.0
      %409 = vmatprep.subr.mxu0 0.0
      %410 = vmatpush1.msra.mxu0 %v377
      %411 = vmatprep.subr.mxu0 0.0
      %412 = vmatpush2.msra.mxu0 0.0
      %413 = vmatprep.subr.mxu0 0.0
      %414 = vmatpush2.msra.mxu0 0.0
      %415 = vmatprep.subr.mxu0 0.0
      %416 = vmatpush2.msra.mxu0 0.0
      %417 = vmatprep.subr.mxu0 0.0
      %418 = vmatpush2.msra.mxu0 0.0
      %419 = vmatprep.subr.mxu0 0.0
      %420 = vmatpush2.msra.mxu0 0.0
      %421 = vmatprep.subr.mxu0 0.0
      %422 = vmatpush2.msra.mxu0 0.0
      %423 = vmatprep.subr.mxu0 0.0
      %424 = vmatpush2.msra.mxu0 0.0
      %425 = vmatprep.subr.mxu0 0.0
      %426 = vmatpush2.msra.mxu0 0.0
      %427 = vmatprep.subr.mxu0 0.0
      %428 = vmatpush2.msra.mxu0 0.0
      %429 = vmatprep.subr.mxu0 0.0
      %430 = vmatpush2.msra.mxu0 0.0
      %431 = vmatprep.subr.mxu0 0.0
      %432 = vmatpush2.msra.mxu0 0.0
      %433 = vmatprep.subr.mxu0 0.0
      %434 = vmatpush2.msra.mxu0 0.0
      %435 = vmatprep.subr.mxu0 0.0
      %436 = vmatpush2.msra.mxu0 0.0
      %437 = vmatprep.subr.mxu0 0.0
      %438 = vmatpush2.msra.mxu0 0.0
      %439 = vmatprep.subr.mxu0 0.0
      %440 = vmatpush2.msra.mxu0 0.0
      %441 = vmatprep.subr.mxu0 0.0
      %442 = vmatpush2.msra.mxu0 0.0
      %443 = vmatprep.mubr.f32.mxu0 0.0
      %444 = vmatmul.mubr.f32.gmra.mxu0 %v375
      %v445 = vpop.f32.mrf.mxu0
      %v446 = vadd.f32 %v371, %v445
      %v447 = vpop.f32.mrf.mxu0
      %448 = vdwg.mxu0
      %s449 = scalar_lea.vmem %s2, 16
      %v450 = vld [vmem:[%s449] sm:$0xff]
      %451 = vrot.lane.b32.xlu0 %v284, 126
      %v452 = vpop.permute.xlu0 %451
      %453 = vrot.lane.b32.xlu0 %v285, 126
      %v454 = vpop.permute.xlu0 %453
      %vm455 = vcmask 1031168
      %v456 = vsel %vm455, %v452, %v454
      %v458 = vsel %vm297, %v450, 0
      %v460 = vsel %vm301, %v456, 0
      %462 = vmatprep.subr.mxu0 0.0
      %463 = vmatpush1.msra.mxu0 0.0
      %464 = vmatprep.subr.mxu0 0.0
      %465 = vmatpush1.msra.mxu0 0.0
      %466 = vmatprep.subr.mxu0 0.0
      %467 = vmatpush1.msra.mxu0 0.0
      %468 = vmatprep.subr.mxu0 0.0
      %469 = vmatpush1.msra.mxu0 0.0
      %470 = vmatprep.subr.mxu0 0.0
      %471 = vmatpush1.msra.mxu0 0.0
      %472 = vmatprep.subr.mxu0 0.0
      %473 = vmatpush1.msra.mxu0 0.0
      %474 = vmatprep.subr.mxu0 0.0
      %475 = vmatpush1.msra.mxu0 0.0
      %476 = vmatprep.subr.mxu0 0.0
      %477 = vmatpush1.msra.mxu0 0.0
      %478 = vmatprep.subr.mxu0 0.0
      %479 = vmatpush1.msra.mxu0 0.0
      %480 = vmatprep.subr.mxu0 0.0
      %481 = vmatpush1.msra.mxu0 0.0
      %482 = vmatprep.subr.mxu0 0.0
      %483 = vmatpush1.msra.mxu0 0.0
      %484 = vmatprep.subr.mxu0 0.0
      %485 = vmatpush1.msra.mxu0 0.0
      %486 = vmatprep.subr.mxu0 0.0
      %487 = vmatpush1.msra.mxu0 0.0
      %488 = vmatprep.subr.mxu0 0.0
      %489 = vmatpush1.msra.mxu0 0.0
      %490 = vmatprep.subr.mxu0 0.0
      %491 = vmatpush1.msra.mxu0 0.0
      %492 = vmatprep.subr.mxu0 0.0
      %493 = vmatpush1.msra.mxu0 %v460
      %494 = vmatprep.subr.mxu0 0.0
      %495 = vmatpush2.msra.mxu0 0.0
      %496 = vmatprep.subr.mxu0 0.0
      %497 = vmatpush2.msra.mxu0 0.0
      %498 = vmatprep.subr.mxu0 0.0
      %499 = vmatpush2.msra.mxu0 0.0
      %500 = vmatprep.subr.mxu0 0.0
      %501 = vmatpush2.msra.mxu0 0.0
      %502 = vmatprep.subr.mxu0 0.0
      %503 = vmatpush2.msra.mxu0 0.0
      %504 = vmatprep.subr.mxu0 0.0
      %505 = vmatpush2.msra.mxu0 0.0
      %506 = vmatprep.subr.mxu0 0.0
      %507 = vmatpush2.msra.mxu0 0.0
      %508 = vmatprep.subr.mxu0 0.0
      %509 = vmatpush2.msra.mxu0 0.0
      %510 = vmatprep.subr.mxu0 0.0
      %511 = vmatpush2.msra.mxu0 0.0
      %512 = vmatprep.subr.mxu0 0.0
      %513 = vmatpush2.msra.mxu0 0.0
      %514 = vmatprep.subr.mxu0 0.0
      %515 = vmatpush2.msra.mxu0 0.0
      %516 = vmatprep.subr.mxu0 0.0
      %517 = vmatpush2.msra.mxu0 0.0
      %518 = vmatprep.subr.mxu0 0.0
      %519 = vmatpush2.msra.mxu0 0.0
      %520 = vmatprep.subr.mxu0 0.0
      %521 = vmatpush2.msra.mxu0 0.0
      %522 = vmatprep.subr.mxu0 0.0
      %523 = vmatpush2.msra.mxu0 0.0
      %524 = vmatprep.subr.mxu0 0.0
      %525 = vmatpush2.msra.mxu0 0.0
      %526 = vmatprep.mubr.f32.mxu0 0.0
      %527 = vmatmul.mubr.f32.gmra.mxu0 %v458
      %v528 = vpop.f32.mrf.mxu0
      %v529 = vadd.f32 0.0, %v528
      %v530 = vpop.f32.mrf.mxu0
      %531 = vdwg.mxu0
      %v532 = vadd.f32 %v446, %v529
      %v533 = vlaneseq
      %v534 = vand.u32 %v533, 127
      %s535 = smul.u32 %s21, 128
      %v536 = vstv %s535
      %v537 = vadd.s32 %v534, %v536
      %vm538 = vcmp.lt.s32.totalorder %v537, 16
      %s539 = ssub.s32 16, %s535
      %p540 = scmp.lt.s32.totalorder %s539, 128
      %s541 = scalar_select %p540, %s539, 128
      %s542 = scvt.s32.f32 %s541
      %v543 = vsel %vm538, 1, 0
      %vm544 = vcmp.eq.s32.totalorder %v543, 1
      %v545 = vsel %vm544, %v532, 0.0
      %546 = vadd.xlane.f32.xlu0 %v545
      %v547 = vpop.xlane.xlu0 %546
      %v548 = vstv %s542
      %v549 = vrcp.pop %v548
      %v550 = vmul.f32 %v547, %v549
      %v551 = vsub.f32 %v532, %v550
      %v552 = vsel %vm544, %v551, 0.0
      %v553 = vmul.f32 %v552, %v552
      %554 = vadd.xlane.f32.xlu0 %v553
      %v555 = vpop.xlane.xlu0 %554
      %vm556 = vcmask 7168
      %557 = vst.msk [vmem:[%s276] sm:$0xff] %vm556, %v547
      %558 = vst.msk [vmem:[%s283] sm:$0xff] %vm556, %v555
      %p559 = scmp.lt.s32.totalorder %s20, 1
      %s560 = scalar_select %p559, %s20, 1
      %p561 = scmp.lt.s32.totalorder %s21, 0
      %s562 = scalar_select %p561, %s21, 0
      %s563 = sadd.s32 %s562, %s560
      %s564 = smul.addr %s563, 8
      %s565 = scalar_lea.vmem %s3, %s564
      %p566 = scmp.lt.s32.totalorder %s20, 1
      %s567 = scalar_select %p566, %s20, 1
      %p568 = scmp.lt.s32.totalorder %s21, 0
      %s569 = scalar_select %p568, %s21, 0
      %s570 = sadd.s32 %s569, %s567
      %s571 = smul.addr %s570, 8
      %s572 = scalar_lea.vmem %s4, %s571
      // Predicated region
      $region33: #{tpu_custom_call.1} parent=31 // pred_check
        %p573 = pneg %p127
      $region34: #{tpu_custom_call.1} parent=31 // pred_check_branch
        %575 = sbr.rel (%p573) target = $region36
      $region35: #{tpu_custom_call.1} parent=31 // pred_region
        _
      $region36: #{tpu_custom_call.1} parent=31 // pred_fallthru
        _
      // Predicated region
      $region37: #{tpu_custom_call.1} parent=31 // pred_check
        %p576 = pneg %p155
      $region38: #{tpu_custom_call.1} parent=31 // pred_check_branch
        %578 = sbr.rel (%p576) target = $region40
      $region39: #{tpu_custom_call.1} parent=31 // pred_region
        _
      $region40: #{tpu_custom_call.1} parent=31 // pred_fallthru
        _
    $region32: #{tpu_custom_call.1} parent=5 // pred_fallthru
      _
    %p579 = scmp.le.s32.totalorder 2, %s11
    // Predicated region
    $region41: #{tpu_custom_call.1} parent=5 // pred_check
      %p580 = pneg %p579
    $region42: #{tpu_custom_call.1} parent=5 // pred_check_branch
      %582 = sbr.rel (%p580) target = $region44
    $region43: #{tpu_custom_call.1} parent=5 // pred_region
      %s583 = ssub.s32 %s11, 2
      // Predicated region
      $region45: #{tpu_custom_call.1} parent=43 // pred_check
        %p584 = pneg %p133
      $region46: #{tpu_custom_call.1} parent=43 // pred_check_branch
        %586 = sbr.rel (%p584) target = $region48
      $region47: #{tpu_custom_call.1} parent=43 // pred_region
        %p587 = scmp.lt.s32.totalorder %s22, 1
        %s588 = scalar_select %p587, %s22, 1
        %p589 = scmp.lt.s32.totalorder %s23, 0
        %s590 = scalar_select %p589, %s23, 0
        %s591 = sadd.s32 %s590, %s588
        %s592 = smul.addr %s591, 8
        %s593 = scalar_lea.vmem %s3, %s592
      $region48: #{tpu_custom_call.1} parent=43 // pred_fallthru
        _
      // Predicated region
      $region49: #{tpu_custom_call.1} parent=43 // pred_check
        %p594 = pneg %p161
      $region50: #{tpu_custom_call.1} parent=43 // pred_check_branch
        %596 = sbr.rel (%p594) target = $region52
      $region51: #{tpu_custom_call.1} parent=43 // pred_region
        %p597 = scmp.lt.s32.totalorder %s22, 1
        %s598 = scalar_select %p597, %s22, 1
        %p599 = scmp.lt.s32.totalorder %s23, 0
        %s600 = scalar_select %p599, %s23, 0
        %s601 = sadd.s32 %s600, %s598
        %s602 = smul.addr %s601, 8
        %s603 = scalar_lea.vmem %s4, %s602
      $region52: #{tpu_custom_call.1} parent=43 // pred_fallthru
        _
    $region44: #{tpu_custom_call.1} parent=5 // pred_fallthru
      _
  $region6: #{tpu_custom_call.1} parent=0 // loop_footer
    %s15 = sadd.s32 1, %s11
  $region7: #{tpu_custom_call.1} parent=0 // loop_footer_branch
    %10 = sbr.rel target = $region3
  $region8: #{tpu_custom_call.1} parent=0 // loop_exit
    _

</llo_original>
